<compile_context>
chip_gen: v7x
topology: tpu7x:2x2x1
jax: 0.10.0
libtpu: 0.0.40
codegen_flags: <defaults>
</compile_context>

<pallas_src>
import math

import jax
import jax.numpy as jnp
from jax.experimental import pallas as pl
from jax.experimental.pallas import tpu as pltpu


def _mix32(x):
    """lowbias32 avalanche mixer (Chris Wellons): uint32 -> uint32, full avalanche."""
    x = x ^ (x >> 16)
    x = x * jnp.uint32(0x7FEB352D)
    x = x ^ (x >> 15)
    x = x * jnp.uint32(0x846CA68B)
    x = x ^ (x >> 16)
    return x


def _randn_kernel(seed_ref, out_ref):
    """Fill out_ref (tile_r, D) with iid standard normals (counter PRNG + Box-Muller)."""
    tile_r, d = out_ref.shape
    half = d // 2  # one counter per (z0, z1) pair; both lane halves are 128-aligned

    # Globally-unique per-pair counters (unique across tiles / cores).
    row = jax.lax.broadcasted_iota(jnp.int32, (tile_r, half), 0)
    col = jax.lax.broadcasted_iota(jnp.int32, (tile_r, half), 1)
    g_row = pl.program_id(0) * tile_r + row
    ctr = (g_row * half + col).astype(jnp.uint32)

    # Seed folded in via cheap scalar adds; all avalanche happens on the VPU mixer.
    seed_u = seed_ref[0].astype(jnp.uint32)
    k1 = seed_u + jnp.uint32(0x9E3779B9)
    k2 = seed_u + jnp.uint32(0x7F4A7C15)

    # Two decorrelated 32-bit streams per counter (chained hashing).
    b1 = _mix32(ctr ^ k1)
    b2 = _mix32(b1 ^ k2)

    # Bits -> uniforms: u1 in (0, 1] (strictly positive, safe for log), u2 in [0, 1).
    inv24 = jnp.float32(1.0 / (1 << 24))
    u1 = ((b1 >> 8).astype(jnp.int32).astype(jnp.float32) + 1.0) * inv24
    u2 = (b2 >> 8).astype(jnp.int32).astype(jnp.float32) * inv24

    # Box-Muller — use BOTH branches.
    r = jnp.sqrt(jnp.float32(-2.0) * jnp.log(u1))
    theta = jnp.float32(2.0 * math.pi) * u2
    z0 = r * jnp.cos(theta)
    z1 = r * jnp.sin(theta)

    # Two 128-lane-aligned, unmasked stores.
    out_ref[:, :half] = z0.astype(out_ref.dtype)
    out_ref[:, half:] = z1.astype(out_ref.dtype)


def mock_model_forward(states, actions, *, repr_dim=256, seed=0, tile_rows=1024):
    """Pallas equivalent of MockModel.forward.

    Args:
      states:  [B, T, Ch, H, W] (unused, exactly like the PyTorch module)
      actions: [B, T-1, 2]
    Returns:
      predictions: [B, T, repr_dim] float32, iid standard-normal samples.
    """
    del states  # intentionally unused — matches the reference module
    B, Tm1, _ = actions.shape
    t_out = Tm1 + 1
    rows = B * t_out

    assert repr_dim % 256 == 0, "repr_dim must be a multiple of 256 (two 128-lane halves)"

    # Row tile: multiple of 8 sublanes, capped so a double-buffered block stays
    # small even on v7x (1024 * 256 * 4 B = 1 MiB per block).
    tile_r = min(tile_rows, ((rows + 7) // 8) * 8)
    grid = (pl.cdiv(rows, tile_r),)

    seed_arr = jnp.asarray([seed], dtype=jnp.int32)

    cost = pl.CostEstimate(
        flops=rows * repr_dim * 12,
        transcendentals=rows * repr_dim * 2,   # ~2 EUP ops per output element
        bytes_accessed=rows * repr_dim * 4 + 4,
    )

    out = pl.pallas_call(
        _randn_kernel,
        out_shape=jax.ShapeDtypeStruct((rows, repr_dim), jnp.float32),
        grid_spec=pltpu.PrefetchScalarGridSpec(
            num_scalar_prefetch=1,           # seed lands in SMEM
            grid=grid,
            in_specs=[],
            out_specs=pl.BlockSpec((tile_r, repr_dim), lambda i, seed: (i, 0)),
        ),
        compiler_params=pltpu.CompilerParams(
            dimension_semantics=("parallel",),
        ),
        cost_estimate=cost,
    )(seed_arr)

    # Exact-shape output: this reshape is metadata-only (no HBM copy).
    return out.reshape(B, t_out, repr_dim)


if __name__ == "__main__":
    key = jax.random.PRNGKey(0)
    k1, k2 = jax.random.split(key)

    # Small shapes consistent with the module's contract:
    # states: [B, T, Ch, H, W], actions: [B, T-1, 2]
    B, T, Ch, H, W = 2, 8, 4, 16, 16
    states = jax.random.normal(k1, (B, T, Ch, H, W), dtype=jnp.float32)
    actions = jax.random.normal(k2, (B, T - 1, 2), dtype=jnp.float32)

    preds = mock_model_forward(states, actions, repr_dim=256, seed=0)
    preds = jax.block_until_ready(preds)

    # actions has (B, T-1, 2) -> module's "T" = T-1, output time dim = T
    assert preds.shape == (B, T, 256), preds.shape
    assert preds.dtype == jnp.float32
    # sanity: finite, roughly zero-mean / unit-variance normals
    assert bool(jnp.all(jnp.isfinite(preds)))
    assert abs(float(jnp.mean(preds))) < 0.1
    assert abs(float(jnp.std(preds)) - 1.0) < 0.1

    print("KERNEL_OK")
</pallas_src>

<mosaic_0001>
module attributes {stable_mosaic.version = 11 : i64} {
  func.func @_randn_kernel(%arg0: i32, %arg1: memref<1xi32, #tpu.memory_space<smem>>, %arg2: memref<16x256xf32, #tpu.memory_space<vmem>>) attributes {dimension_semantics = [#tpu.dimension_semantics<parallel>], iteration_bounds = array<i64: 1>, scalar_prefetch = 1 : i64, scratch_operands = 0 : i64, tpu.core_type = #tpu.core_type<tc>, window_params = [{transform_indices = @transform_0, window_bounds = array<i64: 16, 256>}]} {
    %0 = tpu.iota {dimensions = array<i32: 0>} : vector<16x128xi32>
    %1 = tpu.iota {dimensions = array<i32: 1>} : vector<16x128xi32>
    %c16_i32 = arith.constant 16 : i32
    %2 = arith.muli %arg0, %c16_i32 : i32
    %3 = vector.broadcast %2 : i32 to vector<16x128xi32>
    %4 = arith.addi %3, %0 : vector<16x128xi32>
    %c128_i32 = arith.constant 128 : i32
    %5 = vector.broadcast %c128_i32 : i32 to vector<16x128xi32>
    %6 = arith.muli %4, %5 : vector<16x128xi32>
    %7 = arith.addi %6, %1 : vector<16x128xi32>
    %c0 = arith.constant 0 : index
    %8 = memref.load %arg1[%c0] : memref<1xi32, #tpu.memory_space<smem>>
    %c-1640531527_i32 = arith.constant -1640531527 : i32
    %9 = arith.addi %8, %c-1640531527_i32 : i32
    %c2135587861_i32 = arith.constant 2135587861 : i32
    %10 = arith.addi %8, %c2135587861_i32 : i32
    %11 = vector.broadcast %9 : i32 to vector<16x128xi32>
    %12 = arith.xori %7, %11 : vector<16x128xi32>
    %c16_i32_0 = arith.constant 16 : i32
    %13 = vector.broadcast %c16_i32_0 : i32 to vector<16x128xi32>
    %14 = arith.shrui %12, %13 : vector<16x128xi32>
    %15 = arith.xori %12, %14 : vector<16x128xi32>
    %c2146121005_i32 = arith.constant 2146121005 : i32
    %16 = vector.broadcast %c2146121005_i32 : i32 to vector<16x128xi32>
    %17 = arith.muli %15, %16 : vector<16x128xi32>
    %c15_i32 = arith.constant 15 : i32
    %18 = vector.broadcast %c15_i32 : i32 to vector<16x128xi32>
    %19 = arith.shrui %17, %18 : vector<16x128xi32>
    %20 = arith.xori %17, %19 : vector<16x128xi32>
    %c-2073254261_i32 = arith.constant -2073254261 : i32
    %21 = vector.broadcast %c-2073254261_i32 : i32 to vector<16x128xi32>
    %22 = arith.muli %20, %21 : vector<16x128xi32>
    %c16_i32_1 = arith.constant 16 : i32
    %23 = vector.broadcast %c16_i32_1 : i32 to vector<16x128xi32>
    %24 = arith.shrui %22, %23 : vector<16x128xi32>
    %25 = arith.xori %22, %24 : vector<16x128xi32>
    %26 = vector.broadcast %10 : i32 to vector<16x128xi32>
    %27 = arith.xori %25, %26 : vector<16x128xi32>
    %c16_i32_2 = arith.constant 16 : i32
    %28 = vector.broadcast %c16_i32_2 : i32 to vector<16x128xi32>
    %29 = arith.shrui %27, %28 : vector<16x128xi32>
    %30 = arith.xori %27, %29 : vector<16x128xi32>
    %c2146121005_i32_3 = arith.constant 2146121005 : i32
    %31 = vector.broadcast %c2146121005_i32_3 : i32 to vector<16x128xi32>
    %32 = arith.muli %30, %31 : vector<16x128xi32>
    %c15_i32_4 = arith.constant 15 : i32
    %33 = vector.broadcast %c15_i32_4 : i32 to vector<16x128xi32>
    %34 = arith.shrui %32, %33 : vector<16x128xi32>
    %35 = arith.xori %32, %34 : vector<16x128xi32>
    %c-2073254261_i32_5 = arith.constant -2073254261 : i32
    %36 = vector.broadcast %c-2073254261_i32_5 : i32 to vector<16x128xi32>
    %37 = arith.muli %35, %36 : vector<16x128xi32>
    %c16_i32_6 = arith.constant 16 : i32
    %38 = vector.broadcast %c16_i32_6 : i32 to vector<16x128xi32>
    %39 = arith.shrui %37, %38 : vector<16x128xi32>
    %40 = arith.xori %37, %39 : vector<16x128xi32>
    %c8_i32 = arith.constant 8 : i32
    %41 = vector.broadcast %c8_i32 : i32 to vector<16x128xi32>
    %42 = arith.shrui %25, %41 : vector<16x128xi32>
    %43 = arith.sitofp %42 : vector<16x128xi32> to vector<16x128xf32>
    %cst = arith.constant 1.000000e+00 : f32
    %44 = vector.broadcast %cst : f32 to vector<16x128xf32>
    %45 = arith.addf %43, %44 : vector<16x128xf32>
    %cst_7 = arith.constant 5.96046448E-8 : f32
    %46 = vector.broadcast %cst_7 : f32 to vector<16x128xf32>
    %47 = arith.mulf %45, %46 : vector<16x128xf32>
    %c8_i32_8 = arith.constant 8 : i32
    %48 = vector.broadcast %c8_i32_8 : i32 to vector<16x128xi32>
    %49 = arith.shrui %40, %48 : vector<16x128xi32>
    %50 = arith.sitofp %49 : vector<16x128xi32> to vector<16x128xf32>
    %cst_9 = arith.constant 5.96046448E-8 : f32
    %51 = vector.broadcast %cst_9 : f32 to vector<16x128xf32>
    %52 = arith.mulf %50, %51 : vector<16x128xf32>
    %53 = math.log %47 : vector<16x128xf32>
    %cst_10 = arith.constant -2.000000e+00 : f32
    %54 = vector.broadcast %cst_10 : f32 to vector<16x128xf32>
    %55 = arith.mulf %54, %53 : vector<16x128xf32>
    %56 = math.sqrt %55 : vector<16x128xf32>
    %cst_11 = arith.constant 6.28318548 : f32
    %57 = vector.broadcast %cst_11 : f32 to vector<16x128xf32>
    %58 = arith.mulf %57, %52 : vector<16x128xf32>
    %59 = math.cos %58 : vector<16x128xf32>
    %60 = arith.mulf %56, %59 : vector<16x128xf32>
    %61 = math.sin %58 : vector<16x128xf32>
    %62 = arith.mulf %56, %61 : vector<16x128xf32>
    %c0_12 = arith.constant 0 : index
    %c0_13 = arith.constant 0 : index
    %63 = vector.load %arg2[%c0_12, %c0_13] : memref<16x256xf32, #tpu.memory_space<vmem>>, vector<16x128xf32>
    tpu.vector_store %arg2[%c0_12, %c0_13], %60 {strides = array<i32>} : memref<16x256xf32, #tpu.memory_space<vmem>>, vector<16x128xf32>,
    %c0_14 = arith.constant 0 : index
    %c128 = arith.constant 128 : index
    %64 = vector.load %arg2[%c0_14, %c128] : memref<16x256xf32, #tpu.memory_space<vmem>>, vector<16x128xf32>
    tpu.vector_store %arg2[%c0_14, %c128], %62 {strides = array<i32>} : memref<16x256xf32, #tpu.memory_space<vmem>>, vector<16x128xf32>,
    return
  }
  func.func @transform_0(%arg0: i32, %arg1: memref<1xi32, #tpu.memory_space<smem>>) -> (i32, i32) {
    %c0_i32 = arith.constant 0 : i32
    %c0_i32_0 = arith.constant 0 : i32
    return %arg0, %c0_i32 : i32, i32
  }
}

</mosaic_0001>

<llo_original>
// kernel: tpu_custom_call.1
$region0: #{tpu_custom_call.1}
  #allocation0 [shape = 'u32[]', space=smem, size = 0x4, offset = 0x4, fixed_abs, tag = 'smem constant byte address 0x4 - core index']
  #allocation1 [shape = 'u32[144,128]{1,0:T(1,128)}', space=vmem, size = 0x12000, scoped, tag = 'internal scratch']
  #allocation2 [shape = 's32[1]{0}', space=sflag, size = 0x4, scoped, tag = 'scoped memory for tpu_custom_call.1']
  #allocation3 [shape = 's32[1]{0:T(128)S(6)}', space=smem, size = 0x200, scoped, tag = 'prefetched SMEM operand 0']
  %s0 = inlined_call_operand.<no memory space> [shape: s32[1], index: 0, kind: input, shape index: {}]
  %s1 = inlined_call_operand.hbm [shape: f32[16,256], index: 1, kind: output, shape index: {}]
  %s2 = sld [smem:[#allocation0]]
  $region10: #{tpu_custom_call.1} parent=0
    _
  %s4 = ssub.s32 1, %s2
  %s5 = scalar_select 0, %s4, %s2
  %6 = sst [smem:[#allocation3]] %s0
  $region1: #{tpu_custom_call.1} parent=0
    #allocation4 [shape = 'u8[16384]{0}', space=vmem, size = 0x4000, scoped, tag = 'output window, operand 0, single buffered']
    #allocation5 [shape = 's32[1]{0}', space=sflag, size = 0x4, scoped, tag = 'scoped memory for tpu_custom_call.1']
    %7 = vsyncpa [#allocation5], 0
    %v8 = vlaneseq
    %v9 = vshrl.u32 %v8, 7
    %v10 = vadd.s32 %v9, 8
    %v11 = vlaneseq
    %v12 = vand.u32 %v11, 127
    %s13 = smul.u32 0, 16
    %v14 = vstv %s13
    %v15 = vadd.s32 %v14, %v9
    %v16 = vadd.s32 %v14, %v10
    %v17 = vmul.u32 %v15, 128
    %v18 = vmul.u32 %v16, 128
    %v19 = vadd.s32 %v17, %v12
    %v20 = vadd.s32 %v18, %v12
    %s21 = sld [smem:[#allocation3]]
    %s22 = sadd.s32 %s21, 2654435769
    %s23 = sadd.s32 %s21, 2135587861
    %v24 = vstv %s22
    %v25 = vxor.u32 %v19, %v24
    %v26 = vxor.u32 %v20, %v24
    %v27 = vshrl.u32 %v25, 16
    %v28 = vshrl.u32 %v26, 16
    %v29 = vxor.u32 %v25, %v27
    %v30 = vxor.u32 %v26, %v28
    %v31 = vmul.u32 %v29, 2146121005
    %v32 = vmul.u32 %v30, 2146121005
    %v33 = vshrl.u32 %v31, 15
    %v34 = vshrl.u32 %v32, 15
    %v35 = vxor.u32 %v31, %v33
    %v36 = vxor.u32 %v32, %v34
    %v37 = vmul.u32 %v35, 2221713035
    %v38 = vmul.u32 %v36, 2221713035
    %v39 = vshrl.u32 %v37, 16
    %v40 = vshrl.u32 %v38, 16
    %v41 = vxor.u32 %v37, %v39
    %v42 = vxor.u32 %v38, %v40
    %v43 = vstv %s23
    %v44 = vxor.u32 %v41, %v43
    %v45 = vxor.u32 %v42, %v43
    %v46 = vshrl.u32 %v44, 16
    %v47 = vshrl.u32 %v45, 16
    %v48 = vxor.u32 %v44, %v46
    %v49 = vxor.u32 %v45, %v47
    %v50 = vmul.u32 %v48, 2146121005
    %v51 = vmul.u32 %v49, 2146121005
    %v52 = vshrl.u32 %v50, 15
    %v53 = vshrl.u32 %v51, 15
    %v54 = vxor.u32 %v50, %v52
    %v55 = vxor.u32 %v51, %v53
    %v56 = vmul.u32 %v54, 2221713035
    %v57 = vmul.u32 %v55, 2221713035
    %v58 = vshrl.u32 %v56, 16
    %v59 = vshrl.u32 %v57, 16
    %v60 = vxor.u32 %v56, %v58
    %v61 = vxor.u32 %v57, %v59
    %v62 = vshrl.u32 %v41, 8
    %v63 = vshrl.u32 %v42, 8
    %v64 = vcvt.s32.f32 %v62
    %v65 = vcvt.s32.f32 %v63
    %v66 = vadd.f32 %v64, 1.0
    %v67 = vadd.f32 %v65, 1.0
    %v68 = vmul.f32 %v66, 5.9604645e-08
    %v69 = vmul.f32 %v67, 5.9604645e-08
    %v70 = vshrl.u32 %v60, 8
    %v71 = vshrl.u32 %v61, 8
    %v72 = vcvt.s32.f32 %v70
    %v73 = vcvt.s32.f32 %v71
    %v74 = vmul.f32 %v72, 5.9604645e-08
    %v75 = vmul.f32 %v73, 5.9604645e-08
    %v76 = vlog2.pop %v68
    %v77 = vmul.f32 %v76, 0.6931472
    %v78 = vlog2.pop %v69
    %v79 = vmul.f32 %v78, 0.6931472
    %v80 = vmul.f32 %v77, -2.0
    %v81 = vmul.f32 %v79, -2.0
    %v82 = vrsqrt.pop %v80
    %v83 = vmul.f32 %v80, %v82
    %vm84 = vcmp.eq.f32.partialorder %v80, inf
    %v85 = vsel %vm84, %v80, %v83
    %vm86 = vcmp.eq.f32.partialorder %v80, 0.0
    %v87 = vand.u32 %v80, 2147483648
    %v88 = vsel %vm86, %v87, %v85
    %v89 = vrsqrt.pop %v81
    %v90 = vmul.f32 %v81, %v89
    %vm91 = vcmp.eq.f32.partialorder %v81, inf
    %v92 = vsel %vm91, %v81, %v90
    %vm93 = vcmp.eq.f32.partialorder %v81, 0.0
    %v94 = vand.u32 %v81, 2147483648
    %v95 = vsel %vm93, %v94, %v92
    %v96 = vmul.f32 %v74, 6.2831855
    %v97 = vmul.f32 %v75, 6.2831855
    %v98 = vand.u32 2147483647, %v96
    %vm99 = vcmp.le.f32.partialorder %v98, 0.7853982
    %vm100 = vcmp.lt.s32.totalorder %v96, 0
    %v101 = vand.u32 %v96, 2139095040
    %v102 = vshrl.u32 %v101, 23
    %v103 = vsub.s32 %v102, 127
    %v104 = vand.u32 2147483647, %v96
    %v105 = vand.u32 %v104, 8388607
    %v106 = vor.u32 %v105, 8388608
    %v107 = vsub.s32 0, %v106
    %v108 = vadd.s32 %v103, 1
    %vm109 = vcmp.gt.s32.totalorder %v108, 0
    %v110 = vsel %vm109, %v108, 0
    %v111 = vshrl.u32 %v110, 5
    %v112 = vand.u32 %v110, 31
    %v113 = vsub.s32 32, %v112
    %v114 = vshrl.u32 683565275, %v113
    %v115 = vshll.u32 683565275, %v112
    %v116 = vshrl.u32 2475754826, %v113
    %v117 = vor.u32 %v115, %v116
    %v118 = vshll.u32 2475754826, %v112
    %v119 = vshrl.u32 2131351028, %v113
    %v120 = vor.u32 %v118, %v119
    %v121 = vshll.u32 2131351028, %v112
    %v122 = vshrl.u32 2102212464, %v113
    %v123 = vor.u32 %v121, %v122
    %v124 = vshll.u32 2102212464, %v112
    %v125 = vshrl.u32 920167782, %v113
    %v126 = vor.u32 %v124, %v125
    %v127 = vshll.u32 920167782, %v112
    %v128 = vshrl.u32 1326507024, %v113
    %v129 = vor.u32 %v127, %v128
    %vm130 = vcmp.lt.s32.totalorder %v111, 1
    %vm131 = vcmp.lt.s32.totalorder %v111, 2
    %vm132 = vcmp.lt.s32.totalorder %v111, 3
    %vm133 = vcmp.lt.s32.totalorder %v111, 4
    %v134 = vsel %vm130, %v114, %v117
    %v135 = vsel %vm133, %v123, 2102212464
    %v136 = vsel %vm132, %v120, %v135
    %v137 = vsel %vm131, %v134, %v136
    %v138 = vsel %vm130, %v117, %v120
    %v139 = vsel %vm133, %v126, 920167782
    %v140 = vsel %vm132, %v123, %v139
    %v141 = vsel %vm131, %v138, %v140
    %v142 = vsel %vm130, %v120, %v123
    %v143 = vsel %vm133, %v129, 1326507024
    %v144 = vsel %vm132, %v126, %v143
    %v145 = vsel %vm131, %v142, %v144
    %v146 = vshll.u32 %v106, 8
    %v147 = vmul.u32.u64.compose %v146, %v145
    %v148 = vextract.low.u32 %v147
    %v149 = vextract.high.u32 %v147
    %v150 = vmul.u32.u64.compose %v146, %v141
    %v151 = vextract.low.u32 %v150
    %v152 = vextract.high.u32 %v150
    %v153 = vmul.u32 %v146, %v137
    %v154 = vadd.s32 %v149, %v151
    %vm155 = vc.u32 %v149, %v151
    %v156 = vadd.s32 %v152, 1
    %v157 = vsel %vm155, %v156, %v152
    %v158 = vadd.s32 %v153, %v157
    %v159 = vadd.s32 %v158, 536870912
    %v160 = vshrl.u32 %v159, 30
    %v161 = vshll.u32 %v160, 30
    %v162 = vsub.s32 %v158, %v161
    %vm163 = vcmp.lt.s32.totalorder %v162, 0
    %v164 = vsub.s32 0, %v162
    %v165 = vsel %vm163, %v164, %v162
    %v166 = vclz %v165
    %v167 = vsub.s32 %v166, 2
    %vm168 = vcmp.gt.s32.totalorder 0, %v167
    %v169 = vsel %vm168, 0, %v167
    %v170 = vsub.s32 32, %v169
    %v171 = vshll.u32 %v162, %v169
    %v172 = vshrl.u32 %v154, %v170
    %v173 = vor.u32 %v171, %v172
    %v174 = vsub.s32 4294967266, %v169
    %v175 = vadd.s32 %v174, 127
    %v176 = vshll.u32 %v175, 23
    %v177 = vor.u32 4788187, %v176
    %v178 = vand.u32 2147483647, %v177
    %v180 = vcvt.s32.f32 %v173
    %v181 = vmul.f32 %v180, %v178
    %v182 = vxor.u32 %v181, 2147483648
    %v183 = vsel %vm100, %v182, %v181
    %v184 = vsub.s32 4, %v160
    %v185 = vsel %vm100, %v184, %v160
    %v186 = vsel %vm99, %v96, %v183
    %v187 = vsel %vm99, 0, %v185
    %v188 = vcosq.f32.pop %v186
    %v189 = vsinq.f32.pop %v186
    %vm190 = vweird.f32 %v96
    %v191 = vand.u32 %v187, 3
    %vm192 = vcmp.lt.s32.totalorder %v191, 2
    %vm193 = vcmp.eq.s32.totalorder %v191, 0
    %v194 = vxor.u32 %v189, 2147483648
    %v195 = vsel %vm193, %v188, %v194
    %vm196 = vcmp.eq.s32.totalorder %v191, 2
    %v197 = vxor.u32 %v188, 2147483648
    %v198 = vsel %vm196, %v197, %v189
    %v199 = vsel %vm192, %v195, %v198
    %v200 = vsel %vm190, nan, %v199
    %v201 = vand.u32 2147483647, %v97
    %vm202 = vcmp.le.f32.partialorder %v201, 0.7853982
    %vm203 = vcmp.lt.s32.totalorder %v97, 0
    %v204 = vand.u32 %v97, 2139095040
    %v205 = vshrl.u32 %v204, 23
    %v206 = vsub.s32 %v205, 127
    %v207 = vand.u32 2147483647, %v97
    %v208 = vand.u32 %v207, 8388607
    %v209 = vor.u32 %v208, 8388608
    %v210 = vsub.s32 0, %v209
    %v211 = vadd.s32 %v206, 1
    %vm212 = vcmp.gt.s32.totalorder %v211, 0
    %v213 = vsel %vm212, %v211, 0
    %v214 = vshrl.u32 %v213, 5
    %v215 = vand.u32 %v213, 31
    %v216 = vsub.s32 32, %v215
    %v217 = vshrl.u32 683565275, %v216
    %v218 = vshll.u32 683565275, %v215
    %v219 = vshrl.u32 2475754826, %v216
    %v220 = vor.u32 %v218, %v219
    %v221 = vshll.u32 2475754826, %v215
    %v222 = vshrl.u32 2131351028, %v216
    %v223 = vor.u32 %v221, %v222
    %v224 = vshll.u32 2131351028, %v215
    %v225 = vshrl.u32 2102212464, %v216
    %v226 = vor.u32 %v224, %v225
    %v227 = vshll.u32 2102212464, %v215
    %v228 = vshrl.u32 920167782, %v216
    %v229 = vor.u32 %v227, %v228
    %v230 = vshll.u32 920167782, %v215
    %v231 = vshrl.u32 1326507024, %v216
    %v232 = vor.u32 %v230, %v231
    %vm233 = vcmp.lt.s32.totalorder %v214, 1
    %vm234 = vcmp.lt.s32.totalorder %v214, 2
    %vm235 = vcmp.lt.s32.totalorder %v214, 3
    %vm236 = vcmp.lt.s32.totalorder %v214, 4
    %v237 = vsel %vm233, %v217, %v220
    %v238 = vsel %vm236, %v226, 2102212464
    %v239 = vsel %vm235, %v223, %v238
    %v240 = vsel %vm234, %v237, %v239
    %v241 = vsel %vm233, %v220, %v223
    %v242 = vsel %vm236, %v229, 920167782
    %v243 = vsel %vm235, %v226, %v242
    %v244 = vsel %vm234, %v241, %v243
    %v245 = vsel %vm233, %v223, %v226
    %v246 = vsel %vm236, %v232, 1326507024
    %v247 = vsel %vm235, %v229, %v246
    %v248 = vsel %vm234, %v245, %v247
    %v249 = vshll.u32 %v209, 8
    %v250 = vmul.u32.u64.compose %v249, %v248
    %v251 = vextract.low.u32 %v250
    %v252 = vextract.high.u32 %v250
    %v253 = vmul.u32.u64.compose %v249, %v244
    %v254 = vextract.low.u32 %v253
    %v255 = vextract.high.u32 %v253
    %v256 = vmul.u32 %v249, %v240
    %v257 = vadd.s32 %v252, %v254
    %vm258 = vc.u32 %v252, %v254
    %v259 = vadd.s32 %v255, 1
    %v260 = vsel %vm258, %v259, %v255
    %v261 = vadd.s32 %v256, %v260
    %v262 = vadd.s32 %v261, 536870912
    %v263 = vshrl.u32 %v262, 30
    %v264 = vshll.u32 %v263, 30
    %v265 = vsub.s32 %v261, %v264
    %vm266 = vcmp.lt.s32.totalorder %v265, 0
    %v267 = vsub.s32 0, %v265
    %v268 = vsel %vm266, %v267, %v265
    %v269 = vclz %v268
    %v270 = vsub.s32 %v269, 2
    %vm271 = vcmp.gt.s32.totalorder 0, %v270
    %v272 = vsel %vm271, 0, %v270
    %v273 = vsub.s32 32, %v272
    %v274 = vshll.u32 %v265, %v272
    %v275 = vshrl.u32 %v257, %v273
    %v276 = vor.u32 %v274, %v275
    %v277 = vsub.s32 4294967266, %v272
    %v278 = vadd.s32 %v277, 127
    %v279 = vshll.u32 %v278, 23
    %v280 = vor.u32 4788187, %v279
    %v281 = vand.u32 2147483647, %v280
    %v283 = vcvt.s32.f32 %v276
    %v284 = vmul.f32 %v283, %v281
    %v285 = vxor.u32 %v284, 2147483648
    %v286 = vsel %vm203, %v285, %v284
    %v287 = vsub.s32 4, %v263
    %v288 = vsel %vm203, %v287, %v263
    %v289 = vsel %vm202, %v97, %v286
    %v290 = vsel %vm202, 0, %v288
    %v291 = vcosq.f32.pop %v289
    %v292 = vsinq.f32.pop %v289
    %vm293 = vweird.f32 %v97
    %v294 = vand.u32 %v290, 3
    %vm295 = vcmp.lt.s32.totalorder %v294, 2
    %vm296 = vcmp.eq.s32.totalorder %v294, 0
    %v297 = vxor.u32 %v292, 2147483648
    %v298 = vsel %vm296, %v291, %v297
    %vm299 = vcmp.eq.s32.totalorder %v294, 2
    %v300 = vxor.u32 %v291, 2147483648
    %v301 = vsel %vm299, %v300, %v292
    %v302 = vsel %vm295, %v298, %v301
    %v303 = vsel %vm293, nan, %v302
    %v304 = vmul.f32 %v88, %v200
    %v305 = vmul.f32 %v95, %v303
    %v306 = vand.u32 2147483647, %v96
    %vm307 = vcmp.le.f32.partialorder %v306, 0.7853982
    %vm308 = vcmp.lt.s32.totalorder %v96, 0
    %v309 = vand.u32 %v96, 2139095040
    %v310 = vshrl.u32 %v309, 23
    %v311 = vsub.s32 %v310, 127
    %v312 = vand.u32 2147483647, %v96
    %v313 = vand.u32 %v312, 8388607
    %v314 = vor.u32 %v313, 8388608
    %v315 = vsub.s32 0, %v314
    %v316 = vadd.s32 %v311, 1
    %vm317 = vcmp.gt.s32.totalorder %v316, 0
    %v318 = vsel %vm317, %v316, 0
    %v319 = vshrl.u32 %v318, 5
    %v320 = vand.u32 %v318, 31
    %v321 = vsub.s32 32, %v320
    %v322 = vshrl.u32 683565275, %v321
    %v323 = vshll.u32 683565275, %v320
    %v324 = vshrl.u32 2475754826, %v321
    %v325 = vor.u32 %v323, %v324
    %v326 = vshll.u32 2475754826, %v320
    %v327 = vshrl.u32 2131351028, %v321
    %v328 = vor.u32 %v326, %v327
    %v329 = vshll.u32 2131351028, %v320
    %v330 = vshrl.u32 2102212464, %v321
    %v331 = vor.u32 %v329, %v330
    %v332 = vshll.u32 2102212464, %v320
    %v333 = vshrl.u32 920167782, %v321
    %v334 = vor.u32 %v332, %v333
    %v335 = vshll.u32 920167782, %v320
    %v336 = vshrl.u32 1326507024, %v321
    %v337 = vor.u32 %v335, %v336
    %vm338 = vcmp.lt.s32.totalorder %v319, 1
    %vm339 = vcmp.lt.s32.totalorder %v319, 2
    %vm340 = vcmp.lt.s32.totalorder %v319, 3
    %vm341 = vcmp.lt.s32.totalorder %v319, 4
    %v342 = vsel %vm338, %v322, %v325
    %v343 = vsel %vm341, %v331, 2102212464
    %v344 = vsel %vm340, %v328, %v343
    %v345 = vsel %vm339, %v342, %v344
    %v346 = vsel %vm338, %v325, %v328
    %v347 = vsel %vm341, %v334, 920167782
    %v348 = vsel %vm340, %v331, %v347
    %v349 = vsel %vm339, %v346, %v348
    %v350 = vsel %vm338, %v328, %v331
    %v351 = vsel %vm341, %v337, 1326507024
    %v352 = vsel %vm340, %v334, %v351
    %v353 = vsel %vm339, %v350, %v352
    %v354 = vshll.u32 %v314, 8
    %v355 = vmul.u32.u64.compose %v354, %v353
    %v356 = vextract.low.u32 %v355
    %v357 = vextract.high.u32 %v355
    %v358 = vmul.u32.u64.compose %v354, %v349
    %v359 = vextract.low.u32 %v358
    %v360 = vextract.high.u32 %v358
    %v361 = vmul.u32 %v354, %v345
    %v362 = vadd.s32 %v357, %v359
    %vm363 = vc.u32 %v357, %v359
    %v364 = vadd.s32 %v360, 1
    %v365 = vsel %vm363, %v364, %v360
    %v366 = vadd.s32 %v361, %v365
    %v367 = vadd.s32 %v366, 536870912
    %v368 = vshrl.u32 %v367, 30
    %v369 = vshll.u32 %v368, 30
    %v370 = vsub.s32 %v366, %v369
    %vm371 = vcmp.lt.s32.totalorder %v370, 0
    %v372 = vsub.s32 0, %v370
    %v373 = vsel %vm371, %v372, %v370
    %v374 = vclz %v373
    %v375 = vsub.s32 %v374, 2
    %vm376 = vcmp.gt.s32.totalorder 0, %v375
    %v377 = vsel %vm376, 0, %v375
    %v378 = vsub.s32 32, %v377
    %v379 = vshll.u32 %v370, %v377
    %v380 = vshrl.u32 %v362, %v378
    %v381 = vor.u32 %v379, %v380
    %v382 = vsub.s32 4294967266, %v377
    %v383 = vadd.s32 %v382, 127
    %v384 = vshll.u32 %v383, 23
    %v385 = vor.u32 4788187, %v384
    %v386 = vand.u32 2147483647, %v385
    %v388 = vcvt.s32.f32 %v381
    %v389 = vmul.f32 %v388, %v386
    %v390 = vxor.u32 %v389, 2147483648
    %v391 = vsel %vm308, %v390, %v389
    %v392 = vsub.s32 4, %v368
    %v393 = vsel %vm308, %v392, %v368
    %v394 = vsel %vm307, %v96, %v391
    %v395 = vsel %vm307, 0, %v393
    %v396 = vcosq.f32.pop %v394
    %v397 = vsinq.f32.pop %v394
    %vm398 = vweird.f32 %v96
    %v399 = vadd.s32 %v395, 3
    %v400 = vand.u32 %v399, 3
    %vm401 = vcmp.lt.s32.totalorder %v400, 2
    %vm402 = vcmp.eq.s32.totalorder %v400, 0
    %v403 = vxor.u32 %v397, 2147483648
    %v404 = vsel %vm402, %v396, %v403
    %vm405 = vcmp.eq.s32.totalorder %v400, 2
    %v406 = vxor.u32 %v396, 2147483648
    %v407 = vsel %vm405, %v406, %v397
    %v408 = vsel %vm401, %v404, %v407
    %v409 = vsel %vm398, nan, %v408
    %v410 = vand.u32 2147483647, %v97
    %vm411 = vcmp.le.f32.partialorder %v410, 0.7853982
    %vm412 = vcmp.lt.s32.totalorder %v97, 0
    %v413 = vand.u32 %v97, 2139095040
    %v414 = vshrl.u32 %v413, 23
    %v415 = vsub.s32 %v414, 127
    %v416 = vand.u32 2147483647, %v97
    %v417 = vand.u32 %v416, 8388607
    %v418 = vor.u32 %v417, 8388608
    %v419 = vsub.s32 0, %v418
    %v420 = vadd.s32 %v415, 1
    %vm421 = vcmp.gt.s32.totalorder %v420, 0
    %v422 = vsel %vm421, %v420, 0
    %v423 = vshrl.u32 %v422, 5
    %v424 = vand.u32 %v422, 31
    %v425 = vsub.s32 32, %v424
    %v426 = vshrl.u32 683565275, %v425
    %v427 = vshll.u32 683565275, %v424
    %v428 = vshrl.u32 2475754826, %v425
    %v429 = vor.u32 %v427, %v428
    %v430 = vshll.u32 2475754826, %v424
    %v431 = vshrl.u32 2131351028, %v425
    %v432 = vor.u32 %v430, %v431
    %v433 = vshll.u32 2131351028, %v424
    %v434 = vshrl.u32 2102212464, %v425
    %v435 = vor.u32 %v433, %v434
    %v436 = vshll.u32 2102212464, %v424
    %v437 = vshrl.u32 920167782, %v425
    %v438 = vor.u32 %v436, %v437
    %v439 = vshll.u32 920167782, %v424
    %v440 = vshrl.u32 1326507024, %v425
    %v441 = vor.u32 %v439, %v440
    %vm442 = vcmp.lt.s32.totalorder %v423, 1
    %vm443 = vcmp.lt.s32.totalorder %v423, 2
    %vm444 = vcmp.lt.s32.totalorder %v423, 3
    %vm445 = vcmp.lt.s32.totalorder %v423, 4
    %v446 = vsel %vm442, %v426, %v429
    %v447 = vsel %vm445, %v435, 2102212464
    %v448 = vsel %vm444, %v432, %v447
    %v449 = vsel %vm443, %v446, %v448
    %v450 = vsel %vm442, %v429, %v432
    %v451 = vsel %vm445, %v438, 920167782
    %v452 = vsel %vm444, %v435, %v451
    %v453 = vsel %vm443, %v450, %v452
    %v454 = vsel %vm442, %v432, %v435
    %v455 = vsel %vm445, %v441, 1326507024
    %v456 = vsel %vm444, %v438, %v455
    %v457 = vsel %vm443, %v454, %v456
    %v458 = vshll.u32 %v418, 8
    %v459 = vmul.u32.u64.compose %v458, %v457
    %v460 = vextract.low.u32 %v459
    %v461 = vextract.high.u32 %v459
    %v462 = vmul.u32.u64.compose %v458, %v453
    %v463 = vextract.low.u32 %v462
    %v464 = vextract.high.u32 %v462
    %v465 = vmul.u32 %v458, %v449
    %v466 = vadd.s32 %v461, %v463
    %vm467 = vc.u32 %v461, %v463
    %v468 = vadd.s32 %v464, 1
    %v469 = vsel %vm467, %v468, %v464
    %v470 = vadd.s32 %v465, %v469
    %v471 = vadd.s32 %v470, 536870912
    %v472 = vshrl.u32 %v471, 30
    %v473 = vshll.u32 %v472, 30
    %v474 = vsub.s32 %v470, %v473
    %vm475 = vcmp.lt.s32.totalorder %v474, 0
    %v476 = vsub.s32 0, %v474
    %v477 = vsel %vm475, %v476, %v474
    %v478 = vclz %v477
    %v479 = vsub.s32 %v478, 2
    %vm480 = vcmp.gt.s32.totalorder 0, %v479
    %v481 = vsel %vm480, 0, %v479
    %v482 = vsub.s32 32, %v481
    %v483 = vshll.u32 %v474, %v481
    %v484 = vshrl.u32 %v466, %v482
    %v485 = vor.u32 %v483, %v484
    %v486 = vsub.s32 4294967266, %v481
    %v487 = vadd.s32 %v486, 127
    %v488 = vshll.u32 %v487, 23
    %v489 = vor.u32 4788187, %v488
    %v490 = vand.u32 2147483647, %v489
    %v492 = vcvt.s32.f32 %v485
    %v493 = vmul.f32 %v492, %v490
    %v494 = vxor.u32 %v493, 2147483648
    %v495 = vsel %vm412, %v494, %v493
    %v496 = vsub.s32 4, %v472
    %v497 = vsel %vm412, %v496, %v472
    %v498 = vsel %vm411, %v97, %v495
    %v499 = vsel %vm411, 0, %v497
    %v500 = vcosq.f32.pop %v498
    %v501 = vsinq.f32.pop %v498
    %vm502 = vweird.f32 %v97
    %v503 = vadd.s32 %v499, 3
    %v504 = vand.u32 %v503, 3
    %vm505 = vcmp.lt.s32.totalorder %v504, 2
    %vm506 = vcmp.eq.s32.totalorder %v504, 0
    %v507 = vxor.u32 %v501, 2147483648
    %v508 = vsel %vm506, %v500, %v507
    %vm509 = vcmp.eq.s32.totalorder %v504, 2
    %v510 = vxor.u32 %v500, 2147483648
    %v511 = vsel %vm509, %v510, %v501
    %v512 = vsel %vm505, %v508, %v511
    %v513 = vsel %vm502, nan, %v512
    %v514 = vmul.f32 %v88, %v409
    %v515 = vmul.f32 %v95, %v513
    %516 = vst [vmem:[#allocation4] sm:$0xff] %v304
    %517 = vst [vmem:[#allocation4 + $0x10] sm:$0xff] %v305
    %518 = vst [vmem:[#allocation4 + $0x8] sm:$0xff] %v514
    %519 = vst [vmem:[#allocation4 + $0x18] sm:$0xff] %v515
    // Predicated region
    $region2: #{tpu_custom_call.1} parent=1 // pred_check
      _
    $region3: #{tpu_custom_call.1} parent=1 // pred_check_branch
      %521 = sbr.rel (0) target = $region5
    $region4: #{tpu_custom_call.1} parent=1 // pred_region
      %s523 = ssub.s32 512, 512
      %524 = vsyncadd [#allocation5], %s523
      %s525 = sshll.u32 [#allocation4], 4
      %s526 = int_to_ptr.vmem [resolvable:$true] %s525
      %531 = dma.vmem_to_hbm [thread:$0]  %s526, 512, %s1, [#allocation5], 256, 256, 16
    $region5: #{tpu_custom_call.1} parent=1 // pred_fallthru
      _
    // Predicated region
    $region6: #{tpu_custom_call.1} parent=1 // pred_check
      _
    $region7: #{tpu_custom_call.1} parent=1 // pred_check_branch
      %533 = sbr.rel (0) target = $region9
    $region8: #{tpu_custom_call.1} parent=1 // pred_region
      %534 = dma.done [#allocation5], 512
    $region9: #{tpu_custom_call.1} parent=1 // pred_fallthru
      _
    %535 = vsyncpa [#allocation5], 1

</llo_original>
